<compile_context>
chip_gen: v7x
topology: tpu7x:2x2x1
jax: 0.10.0
libtpu: 0.0.40
codegen_flags: <defaults>
</compile_context>

<pallas_src>
import functools

import jax
import jax.numpy as jnp
import numpy as np
from jax.experimental import pallas as pl
from jax.experimental.pallas import tpu as pltpu


# ----------------------------- Pallas kernel ------------------------------ #
def _pointnet_maxpool_kernel(x_ref, w1_ref, b1_ref, w2_ref, b2_ref,
                             w3_ref, b3_ref, o_ref):
    """Per-row MLP (Din->64->ReLU->128->ReLU->Dout_pad) + max over Dout.

    Matmuls run on the MXU in bf16 with f32 accumulation; bias add, ReLU and
    the max reduction stay in f32.  The result is stored lane-dense as a
    (1, tile_rows) row (one cheap XLU relayout of the (tile,) column).
    """
    x = x_ref[...].astype(jnp.bfloat16)
    w1 = w1_ref[...].astype(jnp.bfloat16)
    w2 = w2_ref[...].astype(jnp.bfloat16)
    w3 = w3_ref[...].astype(jnp.bfloat16)

    h = jnp.dot(x, w1, preferred_element_type=jnp.float32) + b1_ref[...]
    h = jnp.maximum(h, 0.0)
    h = jnp.dot(h.astype(jnp.bfloat16), w2,
                preferred_element_type=jnp.float32) + b2_ref[...]
    h = jnp.maximum(h, 0.0)
    h = jnp.dot(h.astype(jnp.bfloat16), w3,
                preferred_element_type=jnp.float32) + b3_ref[...]   # (T, Dout_pad)

    # Lane-dense store: (1, tile_rows) row instead of a 1-lane-wide column.
    o_ref[...] = jnp.max(h, axis=-1)[None, :]


def _pick_tile_rows(n_rows, max_tile=2048, min_tile=128):
    """Prefer big tiles (amortize per-step overhead, fill the MXU) but keep
    >= 4 grid steps when possible so v7x's two TensorCores both get work."""
    tile = max_tile
    while tile > min_tile and pl.cdiv(n_rows, tile) < 4:
        tile //= 2
    return tile


def pointnet_maxpool(x2d, params, *, max_tile_rows=2048):
    """x2d: (R, Din) f32 -> (R,) f32 = max over output_dim of MLP(x2d)."""
    assert max_tile_rows % 128 == 0
    w1, b1, w2, b2, w3, b3 = params
    r, din = x2d.shape
    h1 = w1.shape[1]
    h2 = w2.shape[1]
    dout = w3.shape[1]

    # Pad Din up to a multiple of 8 (clean sublane layout for the 1st matmul).
    din_pad = ((din + 7) // 8) * 8
    if din_pad != din:
        x2d = jnp.pad(x2d, ((0, 0), (0, din_pad - din)))
        w1 = jnp.pad(w1, ((0, din_pad - din), (0, 0)))

    # Pad Dout up to a multiple of 128 (lane-full last layer); padded bias of
    # -1e30 keeps the row-max exact.
    dout_pad = ((dout + 127) // 128) * 128
    if dout_pad != dout:
        w3 = jnp.pad(w3, ((0, 0), (0, dout_pad - dout)))
        b3 = jnp.pad(b3, ((0, 0), (0, dout_pad - dout)), constant_values=-1e30)

    tile_rows = _pick_tile_rows(r, max_tile_rows)
    n_tiles = pl.cdiv(r, tile_rows)
    r_pad = n_tiles * tile_rows
    if r_pad != r:
        x2d = jnp.pad(x2d, ((0, r_pad - r), (0, 0)))

    out = pl.pallas_call(
        _pointnet_maxpool_kernel,
        out_shape=jax.ShapeDtypeStruct((1, r_pad), jnp.float32),
        grid_spec=pltpu.PrefetchScalarGridSpec(
            num_scalar_prefetch=0,
            grid=(n_tiles,),
            in_specs=[
                pl.BlockSpec((tile_rows, din_pad), lambda i: (i, 0)),
                # Weights/biases: constant index_map -> block is not re-fetched
                # between grid steps by the Pallas pipeline.
                pl.BlockSpec((din_pad, h1), lambda i: (0, 0)),
                pl.BlockSpec((1, h1), lambda i: (0, 0)),
                pl.BlockSpec((h1, h2), lambda i: (0, 0)),
                pl.BlockSpec((1, h2), lambda i: (0, 0)),
                pl.BlockSpec((h2, dout_pad), lambda i: (0, 0)),
                pl.BlockSpec((1, dout_pad), lambda i: (0, 0)),
            ],
            # Lane-dense output row per grid step.
            out_specs=pl.BlockSpec((1, tile_rows), lambda i: (0, i)),
        ),
        compiler_params=pltpu.CompilerParams(
            dimension_semantics=("parallel",)),
    )(x2d, w1, b1, w2, b2, w3, b3)
    return out[0, :r]


# ------------------------------ JAX glue ----------------------------------- #
def farthest_point_sampling(xyz, npoint):
    """xyz: (N, 3). Deterministic start (index 0) instead of torch.randint."""
    n = xyz.shape[0]

    def body(i, carry):
        centroids, distance, farthest = carry
        centroids = centroids.at[i].set(farthest)
        centroid = xyz[farthest]
        dist = jnp.sum((xyz - centroid) ** 2, axis=-1)
        distance = jnp.minimum(distance, dist)
        farthest = jnp.argmax(distance).astype(jnp.int32)
        return centroids, distance, farthest

    centroids0 = jnp.zeros((npoint,), jnp.int32)
    distance0 = jnp.full((n,), 1e10, jnp.float32)
    farthest0 = jnp.int32(0)
    centroids, _, _ = jax.lax.fori_loop(
        0, npoint, body, (centroids0, distance0, farthest0))
    return centroids


def knn(xyz, k):
    """xyz: (N, 3) -> (N, k) indices of k nearest (self included, sorted)."""
    d = jnp.sum((xyz[:, None, :] - xyz[None, :, :]) ** 2, axis=-1)
    _, idx = jax.lax.top_k(-d, k)
    return idx


def make_pointnet_params(key, input_dim, output_dim):
    """Deterministic init matching nn.Linear shapes (stored as (in, out))."""
    dims = [(input_dim, 64), (64, 128), (128, output_dim)]
    params = []
    for i, (din, dout) in enumerate(dims):
        kw, kb = jax.random.split(jax.random.fold_in(key, i))
        bound = 1.0 / np.sqrt(din)
        w = jax.random.uniform(kw, (din, dout), jnp.float32, -bound, bound)
        b = jax.random.uniform(kb, (1, dout), jnp.float32, -bound, bound)
        params += [w, b]
    return tuple(params)


@functools.partial(jax.jit, static_argnames=("npoint", "k"))
def spatial_neighbor_embedding(xyz, features, params, *, npoint, k):
    b, n, _ = xyz.shape

    # --- index glue (plain JAX) ---
    fps_idx = jax.vmap(lambda p: farthest_point_sampling(p, npoint))(xyz)  # (B, npoint)
    new_xyz = jnp.take_along_axis(xyz, fps_idx[..., None], axis=1)         # (B, npoint, 3)
    knn_idx = jax.vmap(lambda p: knn(p, k))(xyz)                           # (B, N, k)

    # --- Pallas hot path ---
    # MLP + channel-max is pointwise over grouped points and grouping is a
    # pure gather, so evaluate once per unique point (B*N rows, not B*N*k)
    # and gather the pooled scalars afterwards.  Exactly equal to running the
    # MLP on the (B, N, k, 3+F_) grouped tensor, but k x cheaper and with no
    # HBM round trip for the grouped tensor.
    x2d = jnp.concatenate([xyz, features], axis=-1).reshape(b * n, -1)     # (B*N, 3+F_)
    pooled = pointnet_maxpool(x2d, params).reshape(b, n)                   # (B, N)
    new_features = jax.vmap(lambda p, i: p[i])(pooled, knn_idx)            # (B, N, k)
    return new_xyz, new_features


# ----------------------------- reference (JAX) ----------------------------- #
def _pointnet_maxpool_ref(x2d, params, *, use_bf16):
    w1, b1, w2, b2, w3, b3 = params

    def mm(a, b):
        if use_bf16:
            a = a.astype(jnp.bfloat16)
            b = b.astype(jnp.bfloat16)
        return jnp.dot(a, b, preferred_element_type=jnp.float32)

    h = jnp.maximum(mm(x2d, w1) + b1, 0.0)
    h = jnp.maximum(mm(h, w2) + b2, 0.0)
    h = mm(h, w3) + b3
    return jnp.max(h, axis=-1)


if __name__ == "__main__":
    # Small shapes consistent with the module (input_dim = 3 + F_).
    B, N, K, NPOINT, F_, OUT_DIM = 4, 64, 16, 16, 2, 32
    INPUT_DIM = 3 + F_

    key = jax.random.PRNGKey(0)
    kxyz, kfeat, kparam = jax.random.split(key, 3)
    xyz = jax.random.uniform(kxyz, (B, N, 3), jnp.float32)
    features = jax.random.uniform(kfeat, (B, N, F_), jnp.float32)
    params = make_pointnet_params(kparam, INPUT_DIM, OUT_DIM)

    new_xyz, new_features = spatial_neighbor_embedding(
        xyz, features, params, npoint=NPOINT, k=K)
    jax.block_until_ready((new_xyz, new_features))

    assert new_xyz.shape == (B, NPOINT, 3)
    assert new_features.shape == (B, N, K)

    # 1) Kernel hot path vs a JAX reference using the same bf16-matmul /
    #    f32-accumulate recipe (tight tolerance).
    x2d = jnp.concatenate([xyz, features], axis=-1).reshape(B * N, INPUT_DIM)
    pooled_pallas = pointnet_maxpool(x2d, params)
    pooled_bf16_ref = _pointnet_maxpool_ref(x2d, params, use_bf16=True)
    np.testing.assert_allclose(np.asarray(pooled_pallas),
                               np.asarray(pooled_bf16_ref),
                               rtol=1e-3, atol=1e-3)

    # 2) Full module output vs a pure-f32 reference of the original grouped
    #    formulation (loose tolerance to cover bf16 matmul rounding).
    knn_idx = jax.vmap(lambda p: knn(p, K))(xyz)
    group = jnp.concatenate(
        [jax.vmap(lambda p, i: p[i])(xyz, knn_idx),
         jax.vmap(lambda p, i: p[i])(features, knn_idx)], axis=-1)
    ref = _pointnet_maxpool_ref(
        group.reshape(B * N * K, INPUT_DIM), params, use_bf16=False
    ).reshape(B, N, K)
    np.testing.assert_allclose(np.asarray(new_features), np.asarray(ref),
                               rtol=5e-2, atol=5e-2)

    print("KERNEL_OK")
</pallas_src>

<mosaic_0001>
module attributes {stable_mosaic.version = 11 : i64} {
  func.func @_pointnet_maxpool_kernel(%arg0: i32, %arg1: memref<128x8xf32, #tpu.memory_space<vmem>>, %arg2: memref<8x64xf32, #tpu.memory_space<vmem>>, %arg3: memref<1x64xf32, #tpu.memory_space<vmem>>, %arg4: memref<64x128xf32, #tpu.memory_space<vmem>>, %arg5: memref<1x128xf32, #tpu.memory_space<vmem>>, %arg6: memref<128x128xf32, #tpu.memory_space<vmem>>, %arg7: memref<1x128xf32, #tpu.memory_space<vmem>>, %arg8: memref<1x128xf32, #tpu.memory_space<vmem>>) attributes {dimension_semantics = [#tpu.dimension_semantics<parallel>], iteration_bounds = array<i64: 2>, scalar_prefetch = 0 : i64, scratch_operands = 0 : i64, tpu.core_type = #tpu.core_type<tc>, window_params = [{transform_indices = @transform_0, window_bounds = array<i64: 128, 8>}, {pipeline_mode = #tpu.pipeline_mode<synchronous>, transform_indices = @transform_1, window_bounds = array<i64: 8, 64>}, {pipeline_mode = #tpu.pipeline_mode<synchronous>, transform_indices = @transform_2, window_bounds = array<i64: 1, 64>}, {pipeline_mode = #tpu.pipeline_mode<synchronous>, transform_indices = @transform_3, window_bounds = array<i64: 64, 128>}, {pipeline_mode = #tpu.pipeline_mode<synchronous>, transform_indices = @transform_4, window_bounds = array<i64: 1, 128>}, {pipeline_mode = #tpu.pipeline_mode<synchronous>, transform_indices = @transform_5, window_bounds = array<i64: 128, 128>}, {pipeline_mode = #tpu.pipeline_mode<synchronous>, transform_indices = @transform_6, window_bounds = array<i64: 1, 128>}, {transform_indices = @transform_7, window_bounds = array<i64: 1, 128>}]} {
    %c0 = arith.constant 0 : index
    %c0_0 = arith.constant 0 : index
    %0 = vector.load %arg1[%c0, %c0_0] : memref<128x8xf32, #tpu.memory_space<vmem>>, vector<128x8xf32>
    %1 = arith.truncf %0 : vector<128x8xf32> to vector<128x8xbf16>
    %c0_1 = arith.constant 0 : index
    %c0_2 = arith.constant 0 : index
    %2 = vector.load %arg2[%c0_1, %c0_2] : memref<8x64xf32, #tpu.memory_space<vmem>>, vector<8x64xf32>
    %3 = arith.truncf %2 : vector<8x64xf32> to vector<8x64xbf16>
    %c0_3 = arith.constant 0 : index
    %c0_4 = arith.constant 0 : index
    %4 = vector.load %arg4[%c0_3, %c0_4] : memref<64x128xf32, #tpu.memory_space<vmem>>, vector<64x128xf32>
    %5 = arith.truncf %4 : vector<64x128xf32> to vector<64x128xbf16>
    %c0_5 = arith.constant 0 : index
    %c0_6 = arith.constant 0 : index
    %6 = vector.load %arg6[%c0_5, %c0_6] : memref<128x128xf32, #tpu.memory_space<vmem>>, vector<128x128xf32>
    %7 = arith.truncf %6 : vector<128x128xf32> to vector<128x128xbf16>
    %cst = arith.constant dense<0.000000e+00> : vector<128x64xf32>
    %8 = tpu.matmul %1, %3, %cst {dimension_numbers = #tpu.dot_dimension_numbers<[1], [0], [0], [1], [0, 0, 1, 1], [], []>} : vector<128x8xbf16>, vector<8x64xbf16>, vector<128x64xf32> -> vector<128x64xf32>
    %c0_7 = arith.constant 0 : index
    %c0_8 = arith.constant 0 : index
    %9 = vector.load %arg3[%c0_7, %c0_8] : memref<1x64xf32, #tpu.memory_space<vmem>>, vector<1x64xf32>
    %10 = vector.broadcast %9 : vector<1x64xf32> to vector<128x64xf32>
    %11 = arith.addf %8, %10 : vector<128x64xf32>
    %cst_9 = arith.constant 0.000000e+00 : f32
    %12 = vector.broadcast %cst_9 : f32 to vector<128x64xf32>
    %13 = arith.maximumf %11, %12 : vector<128x64xf32>
    %14 = arith.truncf %13 : vector<128x64xf32> to vector<128x64xbf16>
    %cst_10 = arith.constant dense<0.000000e+00> : vector<128x128xf32>
    %15 = tpu.matmul %14, %5, %cst_10 {dimension_numbers = #tpu.dot_dimension_numbers<[1], [0], [0], [1], [0, 0, 1, 1], [], []>} : vector<128x64xbf16>, vector<64x128xbf16>, vector<128x128xf32> -> vector<128x128xf32>
    %c0_11 = arith.constant 0 : index
    %c0_12 = arith.constant 0 : index
    %16 = vector.load %arg5[%c0_11, %c0_12] : memref<1x128xf32, #tpu.memory_space<vmem>>, vector<1x128xf32>
    %17 = vector.broadcast %16 : vector<1x128xf32> to vector<128x128xf32>
    %18 = arith.addf %15, %17 : vector<128x128xf32>
    %cst_13 = arith.constant 0.000000e+00 : f32
    %19 = vector.broadcast %cst_13 : f32 to vector<128x128xf32>
    %20 = arith.maximumf %18, %19 : vector<128x128xf32>
    %21 = arith.truncf %20 : vector<128x128xf32> to vector<128x128xbf16>
    %cst_14 = arith.constant dense<0.000000e+00> : vector<128x128xf32>
    %22 = tpu.matmul %21, %7, %cst_14 {dimension_numbers = #tpu.dot_dimension_numbers<[1], [0], [0], [1], [0, 0, 1, 1], [], []>} : vector<128x128xbf16>, vector<128x128xbf16>, vector<128x128xf32> -> vector<128x128xf32>
    %c0_15 = arith.constant 0 : index
    %c0_16 = arith.constant 0 : index
    %23 = vector.load %arg7[%c0_15, %c0_16] : memref<1x128xf32, #tpu.memory_space<vmem>>, vector<1x128xf32>
    %24 = vector.broadcast %23 : vector<1x128xf32> to vector<128x128xf32>
    %25 = arith.addf %22, %24 : vector<128x128xf32>
    %cst_17 = arith.constant dense<0xFF800000> : vector<128xf32>
    %26 = vector.multi_reduction <maximumf>, %25, %cst_17 [1] : vector<128x128xf32> to vector<128xf32>
    %27 = vector.shape_cast %26 : vector<128xf32> to vector<1x128xf32>
    %c0_18 = arith.constant 0 : index
    %c0_19 = arith.constant 0 : index
    %28 = vector.load %arg8[%c0_18, %c0_19] : memref<1x128xf32, #tpu.memory_space<vmem>>, vector<1x128xf32>
    tpu.vector_store %arg8[%c0_18, %c0_19], %27 {strides = array<i32>} : memref<1x128xf32, #tpu.memory_space<vmem>>, vector<1x128xf32>,
    return
  }
  func.func @transform_0(%arg0: i32) -> (i32, i32) {
    %c0_i32 = arith.constant 0 : i32
    %c0_i32_0 = arith.constant 0 : i32
    return %arg0, %c0_i32 : i32, i32
  }
  func.func @transform_1(%arg0: i32) -> (i32, i32) {
    %c0_i32 = arith.constant 0 : i32
    %c0_i32_0 = arith.constant 0 : i32
    %c0_i32_1 = arith.constant 0 : i32
    return %c0_i32, %c0_i32_0 : i32, i32
  }
  func.func @transform_2(%arg0: i32) -> (i32, i32) {
    %c0_i32 = arith.constant 0 : i32
    %c0_i32_0 = arith.constant 0 : i32
    %c0_i32_1 = arith.constant 0 : i32
    return %c0_i32, %c0_i32_0 : i32, i32
  }
  func.func @transform_3(%arg0: i32) -> (i32, i32) {
    %c0_i32 = arith.constant 0 : i32
    %c0_i32_0 = arith.constant 0 : i32
    %c0_i32_1 = arith.constant 0 : i32
    return %c0_i32, %c0_i32_0 : i32, i32
  }
  func.func @transform_4(%arg0: i32) -> (i32, i32) {
    %c0_i32 = arith.constant 0 : i32
    %c0_i32_0 = arith.constant 0 : i32
    %c0_i32_1 = arith.constant 0 : i32
    return %c0_i32, %c0_i32_0 : i32, i32
  }
  func.func @transform_5(%arg0: i32) -> (i32, i32) {
    %c0_i32 = arith.constant 0 : i32
    %c0_i32_0 = arith.constant 0 : i32
    %c0_i32_1 = arith.constant 0 : i32
    return %c0_i32, %c0_i32_0 : i32, i32
  }
  func.func @transform_6(%arg0: i32) -> (i32, i32) {
    %c0_i32 = arith.constant 0 : i32
    %c0_i32_0 = arith.constant 0 : i32
    %c0_i32_1 = arith.constant 0 : i32
    return %c0_i32, %c0_i32_0 : i32, i32
  }
  func.func @transform_7(%arg0: i32) -> (i32, i32) {
    %c0_i32 = arith.constant 0 : i32
    %c0_i32_0 = arith.constant 0 : i32
    return %c0_i32, %arg0 : i32, i32
  }
}

</mosaic_0001>

<llo_original>
// kernel: custom-call.6
$region0: #{custom-call.6}
  %s0 = inlined_call_operand.vmem [shape: f32[4,64], index: 0, kind: output, shape index: {}]

// kernel: neg.1
$region0: #{neg.1}
  #allocation0 [shape = 's32[1]{0}', space=sflag, size = 0x4, scoped, tag = 'scoped memory for neg.1']
  %s0 = inlined_call_operand.vmem [shape: f32[4,64,64], index: 0, kind: input, shape index: {}]
  %s1 = inlined_call_operand.vmem [shape: f32[4,64,64], index: 1, kind: output, shape index: {}]
  %v2 = vld [vmem:[%s0] sm:$0xff]
  %3 = xla_tuple %v2
  %4 = xla_tuple %3
  %v5 = vxor.u32 %v2, 2147483648
  %6 = xla_tuple %v5
  %7 = vst [vmem:[%s1] sm:$0xff] %v5
  %s8 = scalar_lea.vmem %s0, 64
  %v9 = vld [vmem:[%s8] sm:$0xff]
  %10 = xla_tuple %v9
  %11 = xla_tuple %10
  %v12 = vxor.u32 %v9, 2147483648
  %13 = xla_tuple %v12
  %s14 = scalar_lea.vmem %s1, 64
  %15 = vst [vmem:[%s14] sm:$0xff] %v12
  %s16 = scalar_lea.vmem %s0, 128
  %v17 = vld [vmem:[%s16] sm:$0xff]
  %18 = xla_tuple %v17
  %19 = xla_tuple %18
  %v20 = vxor.u32 %v17, 2147483648
  %21 = xla_tuple %v20
  %s22 = scalar_lea.vmem %s1, 128
  %23 = vst [vmem:[%s22] sm:$0xff] %v20
  %s24 = scalar_lea.vmem %s0, 192
  %v25 = vld [vmem:[%s24] sm:$0xff]
  %26 = xla_tuple %v25
  %27 = xla_tuple %26
  %v28 = vxor.u32 %v25, 2147483648
  %29 = xla_tuple %v28
  %s30 = scalar_lea.vmem %s1, 192
  %31 = vst [vmem:[%s30] sm:$0xff] %v28
  %s32 = scalar_lea.vmem %s0, 8
  %v33 = vld [vmem:[%s32] sm:$0xff]
  %34 = xla_tuple %v33
  %35 = xla_tuple %34
  %v36 = vxor.u32 %v33, 2147483648
  %37 = xla_tuple %v36
  %s38 = scalar_lea.vmem %s1, 8
  %39 = vst [vmem:[%s38] sm:$0xff] %v36
  %s40 = scalar_lea.vmem %s0, 72
  %v41 = vld [vmem:[%s40] sm:$0xff]
  %42 = xla_tuple %v41
  %43 = xla_tuple %42
  %v44 = vxor.u32 %v41, 2147483648
  %45 = xla_tuple %v44
  %s46 = scalar_lea.vmem %s1, 72
  %47 = vst [vmem:[%s46] sm:$0xff] %v44
  %s48 = scalar_lea.vmem %s0, 136
  %v49 = vld [vmem:[%s48] sm:$0xff]
  %50 = xla_tuple %v49
  %51 = xla_tuple %50
  %v52 = vxor.u32 %v49, 2147483648
  %53 = xla_tuple %v52
  %s54 = scalar_lea.vmem %s1, 136
  %55 = vst [vmem:[%s54] sm:$0xff] %v52
  %s56 = scalar_lea.vmem %s0, 200
  %v57 = vld [vmem:[%s56] sm:$0xff]
  %58 = xla_tuple %v57
  %59 = xla_tuple %58
  %v60 = vxor.u32 %v57, 2147483648
  %61 = xla_tuple %v60
  %s62 = scalar_lea.vmem %s1, 200
  %63 = vst [vmem:[%s62] sm:$0xff] %v60
  %s64 = scalar_lea.vmem %s0, 16
  %v65 = vld [vmem:[%s64] sm:$0xff]
  %66 = xla_tuple %v65
  %67 = xla_tuple %66
  %v68 = vxor.u32 %v65, 2147483648
  %69 = xla_tuple %v68
  %s70 = scalar_lea.vmem %s1, 16
  %71 = vst [vmem:[%s70] sm:$0xff] %v68
  %s72 = scalar_lea.vmem %s0, 80
  %v73 = vld [vmem:[%s72] sm:$0xff]
  %74 = xla_tuple %v73
  %75 = xla_tuple %74
  %v76 = vxor.u32 %v73, 2147483648
  %77 = xla_tuple %v76
  %s78 = scalar_lea.vmem %s1, 80
  %79 = vst [vmem:[%s78] sm:$0xff] %v76
  %s80 = scalar_lea.vmem %s0, 144
  %v81 = vld [vmem:[%s80] sm:$0xff]
  %82 = xla_tuple %v81
  %83 = xla_tuple %82
  %v84 = vxor.u32 %v81, 2147483648
  %85 = xla_tuple %v84
  %s86 = scalar_lea.vmem %s1, 144
  %87 = vst [vmem:[%s86] sm:$0xff] %v84
  %s88 = scalar_lea.vmem %s0, 208
  %v89 = vld [vmem:[%s88] sm:$0xff]
  %90 = xla_tuple %v89
  %91 = xla_tuple %90
  %v92 = vxor.u32 %v89, 2147483648
  %93 = xla_tuple %v92
  %s94 = scalar_lea.vmem %s1, 208
  %95 = vst [vmem:[%s94] sm:$0xff] %v92
  %s96 = scalar_lea.vmem %s0, 24
  %v97 = vld [vmem:[%s96] sm:$0xff]
  %98 = xla_tuple %v97
  %99 = xla_tuple %98
  %v100 = vxor.u32 %v97, 2147483648
  %101 = xla_tuple %v100
  %s102 = scalar_lea.vmem %s1, 24
  %103 = vst [vmem:[%s102] sm:$0xff] %v100
  %s104 = scalar_lea.vmem %s0, 88
  %v105 = vld [vmem:[%s104] sm:$0xff]
  %106 = xla_tuple %v105
  %107 = xla_tuple %106
  %v108 = vxor.u32 %v105, 2147483648
  %109 = xla_tuple %v108
  %s110 = scalar_lea.vmem %s1, 88
  %111 = vst [vmem:[%s110] sm:$0xff] %v108
  %s112 = scalar_lea.vmem %s0, 152
  %v113 = vld [vmem:[%s112] sm:$0xff]
  %114 = xla_tuple %v113
  %115 = xla_tuple %114
  %v116 = vxor.u32 %v113, 2147483648
  %117 = xla_tuple %v116
  %s118 = scalar_lea.vmem %s1, 152
  %119 = vst [vmem:[%s118] sm:$0xff] %v116
  %s120 = scalar_lea.vmem %s0, 216
  %v121 = vld [vmem:[%s120] sm:$0xff]
  %122 = xla_tuple %v121
  %123 = xla_tuple %122
  %v124 = vxor.u32 %v121, 2147483648
  %125 = xla_tuple %v124
  %s126 = scalar_lea.vmem %s1, 216
  %127 = vst [vmem:[%s126] sm:$0xff] %v124
  %s128 = scalar_lea.vmem %s0, 32
  %v129 = vld [vmem:[%s128] sm:$0xff]
  %130 = xla_tuple %v129
  %131 = xla_tuple %130
  %v132 = vxor.u32 %v129, 2147483648
  %133 = xla_tuple %v132
  %s134 = scalar_lea.vmem %s1, 32
  %135 = vst [vmem:[%s134] sm:$0xff] %v132
  %s136 = scalar_lea.vmem %s0, 96
  %v137 = vld [vmem:[%s136] sm:$0xff]
  %138 = xla_tuple %v137
  %139 = xla_tuple %138
  %v140 = vxor.u32 %v137, 2147483648
  %141 = xla_tuple %v140
  %s142 = scalar_lea.vmem %s1, 96
  %143 = vst [vmem:[%s142] sm:$0xff] %v140
  %s144 = scalar_lea.vmem %s0, 160
  %v145 = vld [vmem:[%s144] sm:$0xff]
  %146 = xla_tuple %v145
  %147 = xla_tuple %146
  %v148 = vxor.u32 %v145, 2147483648
  %149 = xla_tuple %v148
  %s150 = scalar_lea.vmem %s1, 160
  %151 = vst [vmem:[%s150] sm:$0xff] %v148
  %s152 = scalar_lea.vmem %s0, 224
  %v153 = vld [vmem:[%s152] sm:$0xff]
  %154 = xla_tuple %v153
  %155 = xla_tuple %154
  %v156 = vxor.u32 %v153, 2147483648
  %157 = xla_tuple %v156
  %s158 = scalar_lea.vmem %s1, 224
  %159 = vst [vmem:[%s158] sm:$0xff] %v156
  %s160 = scalar_lea.vmem %s0, 40
  %v161 = vld [vmem:[%s160] sm:$0xff]
  %162 = xla_tuple %v161
  %163 = xla_tuple %162
  %v164 = vxor.u32 %v161, 2147483648
  %165 = xla_tuple %v164
  %s166 = scalar_lea.vmem %s1, 40
  %167 = vst [vmem:[%s166] sm:$0xff] %v164
  %s168 = scalar_lea.vmem %s0, 104
  %v169 = vld [vmem:[%s168] sm:$0xff]
  %170 = xla_tuple %v169
  %171 = xla_tuple %170
  %v172 = vxor.u32 %v169, 2147483648
  %173 = xla_tuple %v172
  %s174 = scalar_lea.vmem %s1, 104
  %175 = vst [vmem:[%s174] sm:$0xff] %v172
  %s176 = scalar_lea.vmem %s0, 168
  %v177 = vld [vmem:[%s176] sm:$0xff]
  %178 = xla_tuple %v177
  %179 = xla_tuple %178
  %v180 = vxor.u32 %v177, 2147483648
  %181 = xla_tuple %v180
  %s182 = scalar_lea.vmem %s1, 168
  %183 = vst [vmem:[%s182] sm:$0xff] %v180
  %s184 = scalar_lea.vmem %s0, 232
  %v185 = vld [vmem:[%s184] sm:$0xff]
  %186 = xla_tuple %v185
  %187 = xla_tuple %186
  %v188 = vxor.u32 %v185, 2147483648
  %189 = xla_tuple %v188
  %s190 = scalar_lea.vmem %s1, 232
  %191 = vst [vmem:[%s190] sm:$0xff] %v188
  %s192 = scalar_lea.vmem %s0, 48
  %v193 = vld [vmem:[%s192] sm:$0xff]
  %194 = xla_tuple %v193
  %195 = xla_tuple %194
  %v196 = vxor.u32 %v193, 2147483648
  %197 = xla_tuple %v196
  %s198 = scalar_lea.vmem %s1, 48
  %199 = vst [vmem:[%s198] sm:$0xff] %v196
  %s200 = scalar_lea.vmem %s0, 112
  %v201 = vld [vmem:[%s200] sm:$0xff]
  %202 = xla_tuple %v201
  %203 = xla_tuple %202
  %v204 = vxor.u32 %v201, 2147483648
  %205 = xla_tuple %v204
  %s206 = scalar_lea.vmem %s1, 112
  %207 = vst [vmem:[%s206] sm:$0xff] %v204
  %s208 = scalar_lea.vmem %s0, 176
  %v209 = vld [vmem:[%s208] sm:$0xff]
  %210 = xla_tuple %v209
  %211 = xla_tuple %210
  %v212 = vxor.u32 %v209, 2147483648
  %213 = xla_tuple %v212
  %s214 = scalar_lea.vmem %s1, 176
  %215 = vst [vmem:[%s214] sm:$0xff] %v212
  %s216 = scalar_lea.vmem %s0, 240
  %v217 = vld [vmem:[%s216] sm:$0xff]
  %218 = xla_tuple %v217
  %219 = xla_tuple %218
  %v220 = vxor.u32 %v217, 2147483648
  %221 = xla_tuple %v220
  %s222 = scalar_lea.vmem %s1, 240
  %223 = vst [vmem:[%s222] sm:$0xff] %v220
  %s224 = scalar_lea.vmem %s0, 56
  %v225 = vld [vmem:[%s224] sm:$0xff]
  %226 = xla_tuple %v225
  %227 = xla_tuple %226
  %v228 = vxor.u32 %v225, 2147483648
  %229 = xla_tuple %v228
  %s230 = scalar_lea.vmem %s1, 56
  %231 = vst [vmem:[%s230] sm:$0xff] %v228
  %s232 = scalar_lea.vmem %s0, 120
  %v233 = vld [vmem:[%s232] sm:$0xff]
  %234 = xla_tuple %v233
  %235 = xla_tuple %234
  %v236 = vxor.u32 %v233, 2147483648
  %237 = xla_tuple %v236
  %s238 = scalar_lea.vmem %s1, 120
  %239 = vst [vmem:[%s238] sm:$0xff] %v236
  %s240 = scalar_lea.vmem %s0, 184
  %v241 = vld [vmem:[%s240] sm:$0xff]
  %242 = xla_tuple %v241
  %243 = xla_tuple %242
  %v244 = vxor.u32 %v241, 2147483648
  %245 = xla_tuple %v244
  %s246 = scalar_lea.vmem %s1, 184
  %247 = vst [vmem:[%s246] sm:$0xff] %v244
  %s248 = scalar_lea.vmem %s0, 248
  %v249 = vld [vmem:[%s248] sm:$0xff]
  %250 = xla_tuple %v249
  %251 = xla_tuple %250
  %v252 = vxor.u32 %v249, 2147483648
  %253 = xla_tuple %v252
  %s254 = scalar_lea.vmem %s1, 248
  %255 = vst [vmem:[%s254] sm:$0xff] %v252

// kernel: squeeze.1
$region0: #{squeeze.1}
  %s0 = inlined_call_operand.vmem [shape: f32[256], index: 0, kind: input, shape index: {}]
  %s1 = inlined_call_operand.vmem [shape: f32[4,64], index: 1, kind: output, shape index: {}]
  $region1: #{squeeze.1} parent=0
    #allocation0 [shape = 'u8[4096]{0}', space=vmem, size = 0x1000, scoped, tag = 'scoped mem for output reshape']
    #allocation1 [shape = 'u8[4096]{0}', space=vmem, size = 0x1000, scoped, tag = 'scoped mem for input reshape']
    %s3 = sshllo.u32 0, 2
    %v4 = vld [vmem:[%s0] sm:%s3]
    %5 = vst [vmem:[#allocation1] sm:%s3] %v4
    %v6 = vld [vmem:[#allocation1] sm:$0x3]
    %vm7 = vcmask 523264
    %8 = vst.msk [vmem:[#allocation0] ss:$2 sm:$0x3] %vm7, %v6
    %v9 = vld [vmem:[#allocation1] sm:$0x3]
    %10 = vrot.lane.b32.xlu0 %v9, 64
    %v11 = vpop.permute.xlu0 %10
    %vm12 = vcmask 523264
    %s13 = scalar_lea.vmem [#allocation0], 1
    %14 = vst.msk [vmem:[%s13] ss:$2 sm:$0x3] %vm12, %v11
    %s16 = sshllo.u32 0, 4
    %v18 = vld [vmem:[#allocation0] sm:%s16]
    %s19 = sshllo.u32 0, 4
    %20 = vst [vmem:[%s1] sm:%s19] %v18

// kernel: spatial_neighbor_embedding.1
$region0: #{spatial_neighbor_embedding.1}
  #allocation0 [shape = 'u32[]', space=smem, size = 0x4, offset = 0x4, fixed_abs, tag = 'smem constant byte address 0x4 - core index']
  #allocation1 [shape = 'u32[144,128]{1,0:T(1,128)}', space=vmem, size = 0x12000, scoped, tag = 'internal scratch']
  %s0 = inlined_call_operand.vmem [shape: f32[256,8], index: 0, kind: input, shape index: {}]
  %s1 = inlined_call_operand.vmem [shape: f32[8,64], index: 1, kind: input, shape index: {}]
  %s2 = inlined_call_operand.vmem [shape: f32[1,64], index: 2, kind: input, shape index: {}]
  %s3 = inlined_call_operand.vmem [shape: f32[64,128], index: 3, kind: input, shape index: {}]
  %s4 = inlined_call_operand.vmem [shape: f32[1,128], index: 4, kind: input, shape index: {}]
  %s5 = inlined_call_operand.vmem [shape: f32[128,128], index: 5, kind: input, shape index: {}]
  %s6 = inlined_call_operand.vmem [shape: f32[1,128], index: 6, kind: input, shape index: {}]
  %s7 = inlined_call_operand.vmem [shape: f32[1,256], index: 7, kind: output, shape index: {}]
  %s8 = sld [smem:[#allocation0]]
  $region61: #{spatial_neighbor_embedding.1} parent=0
    _
  %s10 = ssub.s32 1, %s8
  %s11 = scalar_select 0, %s10, %s8
  loop: start=0, step=1, limit=4
  $region2: #{spatial_neighbor_embedding.1} parent=0 // loop_pre_header
    _
  $region3: #{spatial_neighbor_embedding.1} parent=0 // loop_header
    %s13 = sphi 0, %s17
    %p14 = scmp.ge.s32.totalorder %s13, 4
    %s23 = sphi 0, %s25
    %s26 = sphi 0, %s23
    %s27 = sphi 0, %s26
    %s43 = sphi 0, %s27
    %s47 = sphi 0, %s47
    %s49 = sphi 0, %s47
    %s50 = sphi 0, %s49
    %s64 = sphi 0, %s50
    %s68 = sphi 0, %s68
    %s70 = sphi 0, %s68
    %s71 = sphi 0, %s70
    %s85 = sphi 0, %s71
    %s89 = sphi 0, %s89
    %s91 = sphi 0, %s89
    %s92 = sphi 0, %s91
    %s106 = sphi 0, %s92
    %s110 = sphi 0, %s110
    %s112 = sphi 0, %s110
    %s113 = sphi 0, %s112
    %s127 = sphi 0, %s113
    %s131 = sphi 0, %s131
    %s133 = sphi 0, %s131
    %s134 = sphi 0, %s133
    %s148 = sphi 0, %s134
    %s152 = sphi 0, %s152
    %s154 = sphi 0, %s152
    %s155 = sphi 0, %s154
    %s169 = sphi 0, %s155
    %s175 = sphi 0, %s177
    %s178 = sphi 0, %s175
    %s179 = sphi 0, %s178
    %s195 = sphi 0, %s179
  $region4: #{spatial_neighbor_embedding.1} parent=0 // loop_header_branch
    %16 = sbr.rel (%p14) target = $region8
  $region5: #{spatial_neighbor_embedding.1} parent=0 // loop_body
    %s18 = ssub.s32 %s13, 1
    %s19 = ssub.s32 %s13, 2
    %s20 = sadd.s32 %s13, 1
    %s21 = ssub.s32 %s13, %s20
    %p22 = scmp.eq.s32.totalorder %s21, 0
    %s24 = sadd.s32 %s23, 1
    %s25 = scalar_select %p22, %s23, %s24
    %p28 = pneg %p22
    %p29 = scmp.eq.s32.totalorder %s13, 1
    %p30 = por %p28, %p29
    %p31 = scmp.ne.s32.totalorder %s23, %s26
    %p32 = scmp.eq.s32.totalorder %s13, 0
    %p33 = por %p31, %p32
    %p34 = scmp.ne.s32.totalorder %s23, %s26
    %p35 = scmp.eq.s32.totalorder %s18, 1
    %p36 = por %p34, %p35
    %p37 = scmp.ne.s32.totalorder %s26, %s27
    %p38 = scmp.eq.s32.totalorder %s18, 0
    %p39 = por %p37, %p38
    %p40 = scmp.ne.s32.totalorder %s26, %s27
    %p41 = scmp.eq.s32.totalorder %s19, 1
    %p42 = por %p40, %p41
    %p44 = scmp.ne.s32.totalorder %s27, %s43
    %p45 = scmp.eq.s32.totalorder %s19, 0
    %p46 = por %p44, %p45
    %s48 = sadd.s32 %s47, 1
    %p51 = scmp.eq.s32.totalorder %s13, 1
    %p52 = scmp.ne.s32.totalorder %s47, %s49
    %p53 = scmp.eq.s32.totalorder %s13, 0
    %p54 = por %p52, %p53
    %p55 = scmp.ne.s32.totalorder %s47, %s49
    %p56 = scmp.eq.s32.totalorder %s18, 1
    %p57 = por %p55, %p56
    %p58 = scmp.ne.s32.totalorder %s49, %s50
    %p59 = scmp.eq.s32.totalorder %s18, 0
    %p60 = por %p58, %p59
    %p61 = scmp.ne.s32.totalorder %s49, %s50
    %p62 = scmp.eq.s32.totalorder %s19, 1
    %p63 = por %p61, %p62
    %p65 = scmp.ne.s32.totalorder %s50, %s64
    %p66 = scmp.eq.s32.totalorder %s19, 0
    %p67 = por %p65, %p66
    %s69 = sadd.s32 %s68, 1
    %p72 = scmp.eq.s32.totalorder %s13, 1
    %p73 = scmp.ne.s32.totalorder %s68, %s70
    %p74 = scmp.eq.s32.totalorder %s13, 0
    %p75 = por %p73, %p74
    %p76 = scmp.ne.s32.totalorder %s68, %s70
    %p77 = scmp.eq.s32.totalorder %s18, 1
    %p78 = por %p76, %p77
    %p79 = scmp.ne.s32.totalorder %s70, %s71
    %p80 = scmp.eq.s32.totalorder %s18, 0
    %p81 = por %p79, %p80
    %p82 = scmp.ne.s32.totalorder %s70, %s71
    %p83 = scmp.eq.s32.totalorder %s19, 1
    %p84 = por %p82, %p83
    %p86 = scmp.ne.s32.totalorder %s71, %s85
    %p87 = scmp.eq.s32.totalorder %s19, 0
    %p88 = por %p86, %p87
    %s90 = sadd.s32 %s89, 1
    %p93 = scmp.eq.s32.totalorder %s13, 1
    %p94 = scmp.ne.s32.totalorder %s89, %s91
    %p95 = scmp.eq.s32.totalorder %s13, 0
    %p96 = por %p94, %p95
    %p97 = scmp.ne.s32.totalorder %s89, %s91
    %p98 = scmp.eq.s32.totalorder %s18, 1
    %p99 = por %p97, %p98
    %p100 = scmp.ne.s32.totalorder %s91, %s92
    %p101 = scmp.eq.s32.totalorder %s18, 0
    %p102 = por %p100, %p101
    %p103 = scmp.ne.s32.totalorder %s91, %s92
    %p104 = scmp.eq.s32.totalorder %s19, 1
    %p105 = por %p103, %p104
    %p107 = scmp.ne.s32.totalorder %s92, %s106
    %p108 = scmp.eq.s32.totalorder %s19, 0
    %p109 = por %p107, %p108
    %s111 = sadd.s32 %s110, 1
    %p114 = scmp.eq.s32.totalorder %s13, 1
    %p115 = scmp.ne.s32.totalorder %s110, %s112
    %p116 = scmp.eq.s32.totalorder %s13, 0
    %p117 = por %p115, %p116
    %p118 = scmp.ne.s32.totalorder %s110, %s112
    %p119 = scmp.eq.s32.totalorder %s18, 1
    %p120 = por %p118, %p119
    %p121 = scmp.ne.s32.totalorder %s112, %s113
    %p122 = scmp.eq.s32.totalorder %s18, 0
    %p123 = por %p121, %p122
    %p124 = scmp.ne.s32.totalorder %s112, %s113
    %p125 = scmp.eq.s32.totalorder %s19, 1
    %p126 = por %p124, %p125
    %p128 = scmp.ne.s32.totalorder %s113, %s127
    %p129 = scmp.eq.s32.totalorder %s19, 0
    %p130 = por %p128, %p129
    %s132 = sadd.s32 %s131, 1
    %p135 = scmp.eq.s32.totalorder %s13, 1
    %p136 = scmp.ne.s32.totalorder %s131, %s133
    %p137 = scmp.eq.s32.totalorder %s13, 0
    %p138 = por %p136, %p137
    %p139 = scmp.ne.s32.totalorder %s131, %s133
    %p140 = scmp.eq.s32.totalorder %s18, 1
    %p141 = por %p139, %p140
    %p142 = scmp.ne.s32.totalorder %s133, %s134
    %p143 = scmp.eq.s32.totalorder %s18, 0
    %p144 = por %p142, %p143
    %p145 = scmp.ne.s32.totalorder %s133, %s134
    %p146 = scmp.eq.s32.totalorder %s19, 1
    %p147 = por %p145, %p146
    %p149 = scmp.ne.s32.totalorder %s134, %s148
    %p150 = scmp.eq.s32.totalorder %s19, 0
    %p151 = por %p149, %p150
    %s153 = sadd.s32 %s152, 1
    %p156 = scmp.eq.s32.totalorder %s13, 1
    %p157 = scmp.ne.s32.totalorder %s152, %s154
    %p158 = scmp.eq.s32.totalorder %s13, 0
    %p159 = por %p157, %p158
    %p160 = scmp.ne.s32.totalorder %s152, %s154
    %p161 = scmp.eq.s32.totalorder %s18, 1
    %p162 = por %p160, %p161
    %p163 = scmp.ne.s32.totalorder %s154, %s155
    %p164 = scmp.eq.s32.totalorder %s18, 0
    %p165 = por %p163, %p164
    %p166 = scmp.ne.s32.totalorder %s154, %s155
    %p167 = scmp.eq.s32.totalorder %s19, 1
    %p168 = por %p166, %p167
    %p170 = scmp.ne.s32.totalorder %s155, %s169
    %p171 = scmp.eq.s32.totalorder %s19, 0
    %p172 = por %p170, %p171
    %s173 = ssub.s32 %s13, %s20
    %p174 = scmp.eq.s32.totalorder %s173, 0
    %s176 = sadd.s32 %s175, 1
    %s177 = scalar_select %p174, %s175, %s176
    %p180 = pneg %p174
    %p181 = scmp.eq.s32.totalorder %s13, 1
    %p182 = por %p180, %p181
    %p183 = scmp.ne.s32.totalorder %s175, %s178
    %p184 = scmp.eq.s32.totalorder %s13, 0
    %p185 = por %p183, %p184
    %p186 = scmp.ne.s32.totalorder %s175, %s178
    %p187 = scmp.eq.s32.totalorder %s18, 1
    %p188 = por %p186, %p187
    %p189 = scmp.ne.s32.totalorder %s178, %s179
    %p190 = scmp.eq.s32.totalorder %s18, 0
    %p191 = por %p189, %p190
    %p192 = scmp.ne.s32.totalorder %s178, %s179
    %p193 = scmp.eq.s32.totalorder %s19, 1
    %p194 = por %p192, %p193
    %p196 = scmp.ne.s32.totalorder %s179, %s195
    %p197 = scmp.eq.s32.totalorder %s19, 0
    %p198 = por %p196, %p197
    %p199 = scmp.le.s32.totalorder 1, %s13
    %p200 = scmp.lt.s32.totalorder %s13, 3
    %p201 = pnand %p199, %p200
    %p202 = pneg %p201
    // Predicated region
    $region9: #{spatial_neighbor_embedding.1} parent=5 // pred_check
      _
    $region10: #{spatial_neighbor_embedding.1} parent=5 // pred_check_branch
      %204 = sbr.rel (%p201) target = $region12
    $region11: #{spatial_neighbor_embedding.1} parent=5 // pred_region
      %s205 = ssub.s32 %s13, 1
      // Predicated region
      $region13: #{spatial_neighbor_embedding.1} parent=11 // pred_check
        %p206 = pneg %p60
      $region14: #{spatial_neighbor_embedding.1} parent=11 // pred_check_branch
        %208 = sbr.rel (%p206) target = $region16
      $region15: #{spatial_neighbor_embedding.1} parent=11 // pred_region
        _
      $region16: #{spatial_neighbor_embedding.1} parent=11 // pred_fallthru
        _
      // Predicated region
      $region17: #{spatial_neighbor_embedding.1} parent=11 // pred_check
        %p209 = pneg %p81
      $region18: #{spatial_neighbor_embedding.1} parent=11 // pred_check_branch
        %211 = sbr.rel (%p209) target = $region20
      $region19: #{spatial_neighbor_embedding.1} parent=11 // pred_region
        _
      $region20: #{spatial_neighbor_embedding.1} parent=11 // pred_fallthru
        _
      // Predicated region
      $region21: #{spatial_neighbor_embedding.1} parent=11 // pred_check
        %p212 = pneg %p102
      $region22: #{spatial_neighbor_embedding.1} parent=11 // pred_check_branch
        %214 = sbr.rel (%p212) target = $region24
      $region23: #{spatial_neighbor_embedding.1} parent=11 // pred_region
        _
      $region24: #{spatial_neighbor_embedding.1} parent=11 // pred_fallthru
        _
      // Predicated region
      $region25: #{spatial_neighbor_embedding.1} parent=11 // pred_check
        %p215 = pneg %p123
      $region26: #{spatial_neighbor_embedding.1} parent=11 // pred_check_branch
        %217 = sbr.rel (%p215) target = $region28
      $region27: #{spatial_neighbor_embedding.1} parent=11 // pred_region
        _
      $region28: #{spatial_neighbor_embedding.1} parent=11 // pred_fallthru
        _
      // Predicated region
      $region29: #{spatial_neighbor_embedding.1} parent=11 // pred_check
        %p218 = pneg %p144
      $region30: #{spatial_neighbor_embedding.1} parent=11 // pred_check_branch
        %220 = sbr.rel (%p218) target = $region32
      $region31: #{spatial_neighbor_embedding.1} parent=11 // pred_region
        _
      $region32: #{spatial_neighbor_embedding.1} parent=11 // pred_fallthru
        _
      // Predicated region
      $region33: #{spatial_neighbor_embedding.1} parent=11 // pred_check
        %p221 = pneg %p165
      $region34: #{spatial_neighbor_embedding.1} parent=11 // pred_check_branch
        %223 = sbr.rel (%p221) target = $region36
      $region35: #{spatial_neighbor_embedding.1} parent=11 // pred_region
        _
      $region36: #{spatial_neighbor_embedding.1} parent=11 // pred_fallthru
        _
    $region12: #{spatial_neighbor_embedding.1} parent=5 // pred_fallthru
      _
    %p224 = scmp.lt.s32.totalorder %s13, 2
    // Predicated region
    $region37: #{spatial_neighbor_embedding.1} parent=5 // pred_check
      %p225 = pneg %p224
    $region38: #{spatial_neighbor_embedding.1} parent=5 // pred_check_branch
      %227 = sbr.rel (%p225) target = $region40
    $region39: #{spatial_neighbor_embedding.1} parent=5 // pred_region
      // Predicated region
      $region41: #{spatial_neighbor_embedding.1} parent=39 // pred_check
        %p228 = pneg %p33
      $region42: #{spatial_neighbor_embedding.1} parent=39 // pred_check_branch
        %230 = sbr.rel (%p228) target = $region44
      $region43: #{spatial_neighbor_embedding.1} parent=39 // pred_region
        %s231 = smul.u32 16, %s13
        %p232 = scmp.lt.s32.totalorder %s231, 31
        %s233 = scalar_select %p232, %s231, 31
        %s234 = smul.addr %s233, 8
        %s235 = scalar_lea.vmem %s0, %s234
        %s236 = smul.u32 16, %s13
      $region44: #{spatial_neighbor_embedding.1} parent=39 // pred_fallthru
        _
    $region40: #{spatial_neighbor_embedding.1} parent=5 // pred_fallthru
      _
    %p237 = scmp.le.s32.totalorder 1, %s13
    %p238 = scmp.lt.s32.totalorder %s13, 3
    %p239 = pnand %p237, %p238
    %p240 = pneg %p239
    // Predicated region
    $region45: #{spatial_neighbor_embedding.1} parent=5 // pred_check
      _
    $region46: #{spatial_neighbor_embedding.1} parent=5 // pred_check_branch
      %242 = sbr.rel (%p239) target = $region48
    $region47: #{spatial_neighbor_embedding.1} parent=5 // pred_region
      %s243 = ssub.s32 %s13, 1
      %s244 = smul.u32 16, %s18
      %p245 = scmp.lt.s32.totalorder %s244, 31
      %s246 = scalar_select %p245, %s244, 31
      %s247 = smul.addr %s246, 8
      %s248 = scalar_lea.vmem %s0, %s247
      %p249 = pneg %p39
      %p250 = pneg %p36
      %p251 = pneg %p60
      %p252 = pneg %p57
      %p253 = pneg %p81
      %p254 = pneg %p78
      %p255 = pneg %p102
      %p256 = pneg %p99
      %p257 = pneg %p123
      %p258 = pneg %p120
      %p259 = pneg %p144
      %p260 = pneg %p141
      %p261 = pneg %p165
      %p262 = pneg %p162
      %p263 = pneg %p191
      %p264 = pneg %p188
      %p265 = scmp.lt.s32.totalorder %s18, 1
      %s266 = scalar_select %p265, %s18, 1
      %s267 = scalar_lea.vmem %s7, %s266
      %s268 = smul.u32 16, %s18
      %p269 = scmp.lt.s32.totalorder %s268, 31
      %s270 = scalar_select %p269, %s268, 31
      %s271 = smul.addr %s270, 8
      %s272 = scalar_lea.vmem %s0, %s271
      %s273 = smul.u32 16, %s18
      %p274 = scmp.lt.s32.totalorder %s18, 1
      %s275 = scalar_select %p274, %s18, 1
      %s276 = scalar_lea.vmem %s7, %s275
      %v278 = vld [vmem:[%s272] sm:$0xff]
      %v279 = vld [vmem:[%s272 + $0x8] sm:$0xff]
      %v280 = vld [vmem:[%s272 + $0x10] sm:$0xff]
      %v281 = vld [vmem:[%s272 + $0x18] sm:$0xff]
      %v282 = vld [vmem:[%s272 + $0x20] sm:$0xff]
      %v283 = vld [vmem:[%s272 + $0x28] sm:$0xff]
      %v284 = vld [vmem:[%s272 + $0x30] sm:$0xff]
      %v285 = vld [vmem:[%s272 + $0x38] sm:$0xff]
      %v286 = vld [vmem:[%s272 + $0x40] sm:$0xff]
      %v287 = vld [vmem:[%s272 + $0x48] sm:$0xff]
      %v288 = vld [vmem:[%s272 + $0x50] sm:$0xff]
      %v289 = vld [vmem:[%s272 + $0x58] sm:$0xff]
      %v290 = vld [vmem:[%s272 + $0x60] sm:$0xff]
      %v291 = vld [vmem:[%s272 + $0x68] sm:$0xff]
      %v292 = vld [vmem:[%s272 + $0x70] sm:$0xff]
      %v293 = vld [vmem:[%s272 + $0x78] sm:$0xff]
      %v294 = vpack.c.bf16 %v279, %v278
      %v295 = vpack.c.bf16 %v281, %v280
      %v296 = vpack.c.bf16 %v283, %v282
      %v297 = vpack.c.bf16 %v285, %v284
      %v298 = vpack.c.bf16 %v287, %v286
      %v299 = vpack.c.bf16 %v289, %v288
      %v300 = vpack.c.bf16 %v291, %v290
      %v301 = vpack.c.bf16 %v293, %v292
      %v302 = vld [vmem:[%s1] sm:$0xff]
      %v303 = vpack.c.bf16 %v302, %v302
      %v304 = vld [vmem:[%s3] sm:$0xff]
      %v305 = vld [vmem:[%s3 + $0x8] sm:$0xff]
      %v306 = vld [vmem:[%s3 + $0x10] sm:$0xff]
      %v307 = vld [vmem:[%s3 + $0x18] sm:$0xff]
      %v308 = vld [vmem:[%s3 + $0x20] sm:$0xff]
      %v309 = vld [vmem:[%s3 + $0x28] sm:$0xff]
      %v310 = vld [vmem:[%s3 + $0x30] sm:$0xff]
      %v311 = vld [vmem:[%s3 + $0x38] sm:$0xff]
      %v312 = vpack.c.bf16 %v305, %v304
      %v313 = vpack.c.bf16 %v307, %v306
      %v314 = vpack.c.bf16 %v309, %v308
      %v315 = vpack.c.bf16 %v311, %v310
      %v316 = vld [vmem:[%s5] sm:$0xff]
      %v317 = vld [vmem:[%s5 + $0x8] sm:$0xff]
      %v318 = vld [vmem:[%s5 + $0x10] sm:$0xff]
      %v319 = vld [vmem:[%s5 + $0x18] sm:$0xff]
      %v320 = vld [vmem:[%s5 + $0x20] sm:$0xff]
      %v321 = vld [vmem:[%s5 + $0x28] sm:$0xff]
      %v322 = vld [vmem:[%s5 + $0x30] sm:$0xff]
      %v323 = vld [vmem:[%s5 + $0x38] sm:$0xff]
      %v324 = vld [vmem:[%s5 + $0x40] sm:$0xff]
      %v325 = vld [vmem:[%s5 + $0x48] sm:$0xff]
      %v326 = vld [vmem:[%s5 + $0x50] sm:$0xff]
      %v327 = vld [vmem:[%s5 + $0x58] sm:$0xff]
      %v328 = vld [vmem:[%s5 + $0x60] sm:$0xff]
      %v329 = vld [vmem:[%s5 + $0x68] sm:$0xff]
      %v330 = vld [vmem:[%s5 + $0x70] sm:$0xff]
      %v331 = vld [vmem:[%s5 + $0x78] sm:$0xff]
      %v332 = vpack.c.bf16 %v317, %v316
      %v333 = vpack.c.bf16 %v319, %v318
      %v334 = vpack.c.bf16 %v321, %v320
      %v335 = vpack.c.bf16 %v323, %v322
      %v336 = vpack.c.bf16 %v325, %v324
      %v337 = vpack.c.bf16 %v327, %v326
      %v338 = vpack.c.bf16 %v329, %v328
      %v339 = vpack.c.bf16 %v331, %v330
      %v340 = vld [vmem:[%s2] sm:$0x1]
      %v342 = vlaneseq
      %v343 = vshrl.u32 %v342, 7
      %v344 = vsub.s32 0, %v343
      %v345 = vrot.slane %v340, %v344
      %vm347 = vcmask 64512
      %v349 = vsel %vm347, %v294, 0
      %v352 = vsel %vm347, %v295, 0
      %v355 = vsel %vm347, %v296, 0
      %v358 = vsel %vm347, %v297, 0
      %v361 = vsel %vm347, %v298, 0
      %v364 = vsel %vm347, %v299, 0
      %v367 = vsel %vm347, %v300, 0
      %v370 = vsel %vm347, %v301, 0
      %vm372 = vcmask 1043456
      %v374 = vsel %vm372, %v303, 0
      %376 = vmatprep.subr.bf16.mxu0 0
      %377 = vmatpush1.bf16.msra.mxu0 %v374
      %378 = vmatprep.subr.bf16.mxu0 0
      %379 = vmatpush1.bf16.msra.mxu0 0
      %380 = vmatprep.subr.bf16.mxu0 0
      %381 = vmatpush1.bf16.msra.mxu0 0
      %382 = vmatprep.subr.bf16.mxu0 0
      %383 = vmatpush1.bf16.msra.mxu0 0
      %384 = vmatprep.subr.bf16.mxu0 0
      %385 = vmatpush1.bf16.msra.mxu0 0
      %386 = vmatprep.subr.bf16.mxu0 0
      %387 = vmatpush1.bf16.msra.mxu0 0
      %388 = vmatprep.subr.bf16.mxu0 0
      %389 = vmatpush1.bf16.msra.mxu0 0
      %390 = vmatprep.subr.bf16.mxu0 0
      %391 = vmatpush1.bf16.msra.mxu0 0
      %392 = vmatprep.subr.bf16.mxu0 0
      %393 = vmatpush1.bf16.msra.mxu0 0
      %394 = vmatprep.subr.bf16.mxu0 0
      %395 = vmatpush1.bf16.msra.mxu0 0
      %396 = vmatprep.subr.bf16.mxu0 0
      %397 = vmatpush1.bf16.msra.mxu0 0
      %398 = vmatprep.subr.bf16.mxu0 0
      %399 = vmatpush1.bf16.msra.mxu0 0
      %400 = vmatprep.subr.bf16.mxu0 0
      %401 = vmatpush1.bf16.msra.mxu0 0
      %402 = vmatprep.subr.bf16.mxu0 0
      %403 = vmatpush1.bf16.msra.mxu0 0
      %404 = vmatprep.subr.bf16.mxu0 0
      %405 = vmatpush1.bf16.msra.mxu0 0
      %406 = vmatprep.subr.bf16.mxu0 0
      %407 = vmatpush1.bf16.msra.mxu0 0
      %408 = vmatprep.mubr.bf16.mxu0 0
      %409 = vmatmul.mubr.bf16.gmra.mrb[0].mxu0 %v349
      %v410 = vpop.f32.mrb[0].mxu0
      %v411 = vadd.f32 %v345, %v410
      %v412 = vpop.f32.mrb[0].mxu0
      %v413 = vpop.f32.mrb[0].mxu0
      %v414 = vadd.f32 %v345, %v413
      %v415 = vpop.f32.mrb[0].mxu0
      %416 = vmatprep.mubr.bf16.mxu0 0
      %417 = vmatmul.mubr.bf16.gmra.mrb[0].mxu0 %v352
      %v418 = vpop.f32.mrb[0].mxu0
      %v419 = vadd.f32 %v345, %v418
      %v420 = vpop.f32.mrb[0].mxu0
      %v421 = vpop.f32.mrb[0].mxu0
      %v422 = vadd.f32 %v345, %v421
      %v423 = vpop.f32.mrb[0].mxu0
      %424 = vmatprep.mubr.bf16.mxu0 0
      %425 = vmatmul.mubr.bf16.gmra.mrb[0].mxu0 %v355
      %v426 = vpop.f32.mrb[0].mxu0
      %v427 = vadd.f32 %v345, %v426
      %v428 = vpop.f32.mrb[0].mxu0
      %v429 = vpop.f32.mrb[0].mxu0
      %v430 = vadd.f32 %v345, %v429
      %v431 = vpop.f32.mrb[0].mxu0
      %432 = vmatprep.mubr.bf16.mxu0 0
      %433 = vmatmul.mubr.bf16.gmra.mrb[0].mxu0 %v358
      %v434 = vpop.f32.mrb[0].mxu0
      %v435 = vadd.f32 %v345, %v434
      %v436 = vpop.f32.mrb[0].mxu0
      %v437 = vpop.f32.mrb[0].mxu0
      %v438 = vadd.f32 %v345, %v437
      %v439 = vpop.f32.mrb[0].mxu0
      %440 = vmatprep.mubr.bf16.mxu0 0
      %441 = vmatmul.mubr.bf16.gmra.mrb[0].mxu0 %v361
      %v442 = vpop.f32.mrb[0].mxu0
      %v443 = vadd.f32 %v345, %v442
      %v444 = vpop.f32.mrb[0].mxu0
      %v445 = vpop.f32.mrb[0].mxu0
      %v446 = vadd.f32 %v345, %v445
      %v447 = vpop.f32.mrb[0].mxu0
      %448 = vmatprep.mubr.bf16.mxu0 0
      %449 = vmatmul.mubr.bf16.gmra.mrb[0].mxu0 %v364
      %v450 = vpop.f32.mrb[0].mxu0
      %v451 = vadd.f32 %v345, %v450
      %v452 = vpop.f32.mrb[0].mxu0
      %v453 = vpop.f32.mrb[0].mxu0
      %v454 = vadd.f32 %v345, %v453
      %v455 = vpop.f32.mrb[0].mxu0
      %456 = vmatprep.mubr.bf16.mxu0 0
      %457 = vmatmul.mubr.bf16.gmra.mrb[0].mxu0 %v367
      %v458 = vpop.f32.mrb[0].mxu0
      %v459 = vadd.f32 %v345, %v458
      %v460 = vpop.f32.mrb[0].mxu0
      %v461 = vpop.f32.mrb[0].mxu0
      %v462 = vadd.f32 %v345, %v461
      %v463 = vpop.f32.mrb[0].mxu0
      %464 = vmatprep.mubr.bf16.mxu0 0
      %465 = vmatmul.mubr.bf16.gmra.mrb[0].mxu0 %v370
      %v466 = vpop.f32.mrb[0].mxu0
      %v467 = vadd.f32 %v345, %v466
      %v468 = vpop.f32.mrb[0].mxu0
      %v469 = vpop.f32.mrb[0].mxu0
      %v470 = vadd.f32 %v345, %v469
      %v471 = vpop.f32.mrb[0].mxu0
      %472 = vdwg.mxu0
      %v473 = vmax.f32 %v411, 0.0
      %v474 = vmax.f32 %v414, 0.0
      %v475 = vmax.f32 %v419, 0.0
      %v476 = vmax.f32 %v422, 0.0
      %v477 = vmax.f32 %v427, 0.0
      %v478 = vmax.f32 %v430, 0.0
      %v479 = vmax.f32 %v435, 0.0
      %v480 = vmax.f32 %v438, 0.0
      %v481 = vmax.f32 %v443, 0.0
      %v482 = vmax.f32 %v446, 0.0
      %v483 = vmax.f32 %v451, 0.0
      %v484 = vmax.f32 %v454, 0.0
      %v485 = vmax.f32 %v459, 0.0
      %v486 = vmax.f32 %v462, 0.0
      %v487 = vmax.f32 %v467, 0.0
      %v488 = vmax.f32 %v470, 0.0
      %v489 = vpack.c.bf16 %v474, %v473
      %v490 = vpack.c.bf16 %v476, %v475
      %v491 = vpack.c.bf16 %v478, %v477
      %v492 = vpack.c.bf16 %v480, %v479
      %v493 = vpack.c.bf16 %v482, %v481
      %v494 = vpack.c.bf16 %v484, %v483
      %v495 = vpack.c.bf16 %v486, %v485
      %v496 = vpack.c.bf16 %v488, %v487
      %v497 = vld [vmem:[%s4] sm:$0x1]
      %v499 = vlaneseq
      %v500 = vshrl.u32 %v499, 7
      %v501 = vsub.s32 0, %v500
      %v502 = vrot.slane %v497, %v501
      %vm504 = vcmask 523264
      %v506 = vsel %vm504, %v489, 0
      %v509 = vsel %vm504, %v490, 0
      %v512 = vsel %vm504, %v491, 0
      %v515 = vsel %vm504, %v492, 0
      %v518 = vsel %vm504, %v493, 0
      %v521 = vsel %vm504, %v494, 0
      %v524 = vsel %vm504, %v495, 0
      %v527 = vsel %vm504, %v496, 0
      %529 = vmatprep.subr.bf16.mxu0 0
      %530 = vmatpush1.bf16.msra.mxu0 %v312
      %531 = vmatprep.subr.bf16.mxu0 0
      %532 = vmatpush1.bf16.msra.mxu0 %v313
      %533 = vmatprep.subr.bf16.mxu0 0
      %534 = vmatpush1.bf16.msra.mxu0 %v314
      %535 = vmatprep.subr.bf16.mxu0 0
      %536 = vmatpush1.bf16.msra.mxu0 %v315
      %537 = vmatprep.subr.bf16.mxu0 0
      %538 = vmatpush1.bf16.msra.mxu0 0
      %539 = vmatprep.subr.bf16.mxu0 0
      %540 = vmatpush1.bf16.msra.mxu0 0
      %541 = vmatprep.subr.bf16.mxu0 0
      %542 = vmatpush1.bf16.msra.mxu0 0
      %543 = vmatprep.subr.bf16.mxu0 0
      %544 = vmatpush1.bf16.msra.mxu0 0
      %545 = vmatprep.subr.bf16.mxu0 0
      %546 = vmatpush1.bf16.msra.mxu0 0
      %547 = vmatprep.subr.bf16.mxu0 0
      %548 = vmatpush1.bf16.msra.mxu0 0
      %549 = vmatprep.subr.bf16.mxu0 0
      %550 = vmatpush1.bf16.msra.mxu0 0
      %551 = vmatprep.subr.bf16.mxu0 0
      %552 = vmatpush1.bf16.msra.mxu0 0
      %553 = vmatprep.subr.bf16.mxu0 0
      %554 = vmatpush1.bf16.msra.mxu0 0
      %555 = vmatprep.subr.bf16.mxu0 0
      %556 = vmatpush1.bf16.msra.mxu0 0
      %557 = vmatprep.subr.bf16.mxu0 0
      %558 = vmatpush1.bf16.msra.mxu0 0
      %559 = vmatprep.subr.bf16.mxu0 0
      %560 = vmatpush1.bf16.msra.mxu0 0
      %561 = vmatprep.mubr.bf16.mxu0 0
      %562 = vmatmul.mubr.bf16.gmra.mrb[0].mxu0 %v506
      %v563 = vpop.f32.mrb[0].mxu0
      %v564 = vadd.f32 %v502, %v563
      %v565 = vpop.f32.mrb[0].mxu0
      %v566 = vpop.f32.mrb[0].mxu0
      %v567 = vadd.f32 %v502, %v566
      %v568 = vpop.f32.mrb[0].mxu0
      %569 = vmatprep.mubr.bf16.mxu0 0
      %570 = vmatmul.mubr.bf16.gmra.mrb[0].mxu0 %v509
      %v571 = vpop.f32.mrb[0].mxu0
      %v572 = vadd.f32 %v502, %v571
      %v573 = vpop.f32.mrb[0].mxu0
      %v574 = vpop.f32.mrb[0].mxu0
      %v575 = vadd.f32 %v502, %v574
      %v576 = vpop.f32.mrb[0].mxu0
      %577 = vmatprep.mubr.bf16.mxu0 0
      %578 = vmatmul.mubr.bf16.gmra.mrb[0].mxu0 %v512
      %v579 = vpop.f32.mrb[0].mxu0
      %v580 = vadd.f32 %v502, %v579
      %v581 = vpop.f32.mrb[0].mxu0
      %v582 = vpop.f32.mrb[0].mxu0
      %v583 = vadd.f32 %v502, %v582
      %v584 = vpop.f32.mrb[0].mxu0
      %585 = vmatprep.mubr.bf16.mxu0 0
      %586 = vmatmul.mubr.bf16.gmra.mrb[0].mxu0 %v515
      %v587 = vpop.f32.mrb[0].mxu0
      %v588 = vadd.f32 %v502, %v587
      %v589 = vpop.f32.mrb[0].mxu0
      %v590 = vpop.f32.mrb[0].mxu0
      %v591 = vadd.f32 %v502, %v590
      %v592 = vpop.f32.mrb[0].mxu0
      %593 = vmatprep.mubr.bf16.mxu0 0
      %594 = vmatmul.mubr.bf16.gmra.mrb[0].mxu0 %v518
      %v595 = vpop.f32.mrb[0].mxu0
      %v596 = vadd.f32 %v502, %v595
      %v597 = vpop.f32.mrb[0].mxu0
      %v598 = vpop.f32.mrb[0].mxu0
      %v599 = vadd.f32 %v502, %v598
      %v600 = vpop.f32.mrb[0].mxu0
      %601 = vmatprep.mubr.bf16.mxu0 0
      %602 = vmatmul.mubr.bf16.gmra.mrb[0].mxu0 %v521
      %v603 = vpop.f32.mrb[0].mxu0
      %v604 = vadd.f32 %v502, %v603
      %v605 = vpop.f32.mrb[0].mxu0
      %v606 = vpop.f32.mrb[0].mxu0
      %v607 = vadd.f32 %v502, %v606
      %v608 = vpop.f32.mrb[0].mxu0
      %609 = vmatprep.mubr.bf16.mxu0 0
      %610 = vmatmul.mubr.bf16.gmra.mrb[0].mxu0 %v524
      %v611 = vpop.f32.mrb[0].mxu0
      %v612 = vadd.f32 %v502, %v611
      %v613 = vpop.f32.mrb[0].mxu0
      %v614 = vpop.f32.mrb[0].mxu0
      %v615 = vadd.f32 %v502, %v614
      %v616 = vpop.f32.mrb[0].mxu0
      %617 = vmatprep.mubr.bf16.mxu0 0
      %618 = vmatmul.mubr.bf16.gmra.mrb[0].mxu0 %v527
      %v619 = vpop.f32.mrb[0].mxu0
      %v620 = vadd.f32 %v502, %v619
      %v621 = vpop.f32.mrb[0].mxu0
      %v622 = vpop.f32.mrb[0].mxu0
      %v623 = vadd.f32 %v502, %v622
      %v624 = vpop.f32.mrb[0].mxu0
      %625 = vdwg.mxu0
      %v626 = vmax.f32 %v564, 0.0
      %v627 = vmax.f32 %v567, 0.0
      %v628 = vmax.f32 %v572, 0.0
      %v629 = vmax.f32 %v575, 0.0
      %v630 = vmax.f32 %v580, 0.0
      %v631 = vmax.f32 %v583, 0.0
      %v632 = vmax.f32 %v588, 0.0
      %v633 = vmax.f32 %v591, 0.0
      %v634 = vmax.f32 %v596, 0.0
      %v635 = vmax.f32 %v599, 0.0
      %v636 = vmax.f32 %v604, 0.0
      %v637 = vmax.f32 %v607, 0.0
      %v638 = vmax.f32 %v612, 0.0
      %v639 = vmax.f32 %v615, 0.0
      %v640 = vmax.f32 %v620, 0.0
      %v641 = vmax.f32 %v623, 0.0
      %v642 = vpack.c.bf16 %v627, %v626
      %v643 = vpack.c.bf16 %v629, %v628
      %v644 = vpack.c.bf16 %v631, %v630
      %v645 = vpack.c.bf16 %v633, %v632
      %v646 = vpack.c.bf16 %v635, %v634
      %v647 = vpack.c.bf16 %v637, %v636
      %v648 = vpack.c.bf16 %v639, %v638
      %v649 = vpack.c.bf16 %v641, %v640
      %v650 = vld [vmem:[%s6] sm:$0x1]
      %v652 = vlaneseq
      %v653 = vshrl.u32 %v652, 7
      %v654 = vsub.s32 0, %v653
      %v655 = vrot.slane %v650, %v654
      %657 = vmatprep.subr.bf16.mxu0 0
      %658 = vmatpush1.bf16.msra.mxu0 %v332
      %659 = vmatprep.subr.bf16.mxu0 0
      %660 = vmatpush1.bf16.msra.mxu0 %v333
      %661 = vmatprep.subr.bf16.mxu0 0
      %662 = vmatpush1.bf16.msra.mxu0 %v334
      %663 = vmatprep.subr.bf16.mxu0 0
      %664 = vmatpush1.bf16.msra.mxu0 %v335
      %665 = vmatprep.subr.bf16.mxu0 0
      %666 = vmatpush1.bf16.msra.mxu0 %v336
      %667 = vmatprep.subr.bf16.mxu0 0
      %668 = vmatpush1.bf16.msra.mxu0 %v337
      %669 = vmatprep.subr.bf16.mxu0 0
      %670 = vmatpush1.bf16.msra.mxu0 %v338
      %671 = vmatprep.subr.bf16.mxu0 0
      %672 = vmatpush1.bf16.msra.mxu0 %v339
      %673 = vmatprep.subr.bf16.mxu0 0
      %674 = vmatpush1.bf16.msra.mxu0 0
      %675 = vmatprep.subr.bf16.mxu0 0
      %676 = vmatpush1.bf16.msra.mxu0 0
      %677 = vmatprep.subr.bf16.mxu0 0
      %678 = vmatpush1.bf16.msra.mxu0 0
      %679 = vmatprep.subr.bf16.mxu0 0
      %680 = vmatpush1.bf16.msra.mxu0 0
      %681 = vmatprep.subr.bf16.mxu0 0
      %682 = vmatpush1.bf16.msra.mxu0 0
      %683 = vmatprep.subr.bf16.mxu0 0
      %684 = vmatpush1.bf16.msra.mxu0 0
      %685 = vmatprep.subr.bf16.mxu0 0
      %686 = vmatpush1.bf16.msra.mxu0 0
      %687 = vmatprep.subr.bf16.mxu0 0
      %688 = vmatpush1.bf16.msra.mxu0 0
      %689 = vmatprep.mubr.bf16.mxu0 0
      %690 = vmatmul.mubr.bf16.gmra.mrb[0].mxu0 %v642
      %v691 = vpop.f32.mrb[0].mxu0
      %v692 = vadd.f32 %v655, %v691
      %v693 = vpop.f32.mrb[0].mxu0
      %v694 = vpop.f32.mrb[0].mxu0
      %v695 = vadd.f32 %v655, %v694
      %v696 = vpop.f32.mrb[0].mxu0
      %697 = vmatprep.mubr.bf16.mxu0 0
      %698 = vmatmul.mubr.bf16.gmra.mrb[0].mxu0 %v643
      %v699 = vpop.f32.mrb[0].mxu0
      %v700 = vadd.f32 %v655, %v699
      %v701 = vpop.f32.mrb[0].mxu0
      %v702 = vpop.f32.mrb[0].mxu0
      %v703 = vadd.f32 %v655, %v702
      %v704 = vpop.f32.mrb[0].mxu0
      %705 = vmatprep.mubr.bf16.mxu0 0
      %706 = vmatmul.mubr.bf16.gmra.mrb[0].mxu0 %v644
      %v707 = vpop.f32.mrb[0].mxu0
      %v708 = vadd.f32 %v655, %v707
      %v709 = vpop.f32.mrb[0].mxu0
      %v710 = vpop.f32.mrb[0].mxu0
      %v711 = vadd.f32 %v655, %v710
      %v712 = vpop.f32.mrb[0].mxu0
      %713 = vmatprep.mubr.bf16.mxu0 0
      %714 = vmatmul.mubr.bf16.gmra.mrb[0].mxu0 %v645
      %v715 = vpop.f32.mrb[0].mxu0
      %v716 = vadd.f32 %v655, %v715
      %v717 = vpop.f32.mrb[0].mxu0
      %v718 = vpop.f32.mrb[0].mxu0
      %v719 = vadd.f32 %v655, %v718
      %v720 = vpop.f32.mrb[0].mxu0
      %721 = vmatprep.mubr.bf16.mxu0 0
      %722 = vmatmul.mubr.bf16.gmra.mrb[0].mxu0 %v646
      %v723 = vpop.f32.mrb[0].mxu0
      %v724 = vadd.f32 %v655, %v723
      %v725 = vpop.f32.mrb[0].mxu0
      %v726 = vpop.f32.mrb[0].mxu0
      %v727 = vadd.f32 %v655, %v726
      %v728 = vpop.f32.mrb[0].mxu0
      %729 = vmatprep.mubr.bf16.mxu0 0
      %730 = vmatmul.mubr.bf16.gmra.mrb[0].mxu0 %v647
      %v731 = vpop.f32.mrb[0].mxu0
      %v732 = vadd.f32 %v655, %v731
      %v733 = vpop.f32.mrb[0].mxu0
      %v734 = vpop.f32.mrb[0].mxu0
      %v735 = vadd.f32 %v655, %v734
      %v736 = vpop.f32.mrb[0].mxu0
      %737 = vmatprep.mubr.bf16.mxu0 0
      %738 = vmatmul.mubr.bf16.gmra.mrb[0].mxu0 %v648
      %v739 = vpop.f32.mrb[0].mxu0
      %v740 = vadd.f32 %v655, %v739
      %v741 = vpop.f32.mrb[0].mxu0
      %v742 = vpop.f32.mrb[0].mxu0
      %v743 = vadd.f32 %v655, %v742
      %v744 = vpop.f32.mrb[0].mxu0
      %745 = vmatprep.mubr.bf16.mxu0 0
      %746 = vmatmul.mubr.bf16.gmra.mrb[0].mxu0 %v649
      %v747 = vpop.f32.mrb[0].mxu0
      %v748 = vadd.f32 %v655, %v747
      %v749 = vpop.f32.mrb[0].mxu0
      %v750 = vpop.f32.mrb[0].mxu0
      %v751 = vadd.f32 %v655, %v750
      %v752 = vpop.f32.mrb[0].mxu0
      %753 = vdwg.mxu0
      %754 = vmax.xlane.f32.xlu0 %v692
      %v755 = vpop.xlane.xlu0 %754
      %756 = vmax.xlane.f32.xlu0 %v695
      %v757 = vpop.xlane.xlu0 %756
      %758 = vmax.xlane.f32.xlu0 %v700
      %v759 = vpop.xlane.xlu0 %758
      %760 = vmax.xlane.f32.xlu0 %v703
      %v761 = vpop.xlane.xlu0 %760
      %762 = vmax.xlane.f32.xlu0 %v708
      %v763 = vpop.xlane.xlu0 %762
      %764 = vmax.xlane.f32.xlu0 %v711
      %v765 = vpop.xlane.xlu0 %764
      %766 = vmax.xlane.f32.xlu0 %v716
      %v767 = vpop.xlane.xlu0 %766
      %768 = vmax.xlane.f32.xlu0 %v719
      %v769 = vpop.xlane.xlu0 %768
      %770 = vmax.xlane.f32.xlu0 %v724
      %v771 = vpop.xlane.xlu0 %770
      %772 = vmax.xlane.f32.xlu0 %v727
      %v773 = vpop.xlane.xlu0 %772
      %774 = vmax.xlane.f32.xlu0 %v732
      %v775 = vpop.xlane.xlu0 %774
      %776 = vmax.xlane.f32.xlu0 %v735
      %v777 = vpop.xlane.xlu0 %776
      %778 = vmax.xlane.f32.xlu0 %v740
      %v779 = vpop.xlane.xlu0 %778
      %780 = vmax.xlane.f32.xlu0 %v743
      %v781 = vpop.xlane.xlu0 %780
      %782 = vmax.xlane.f32.xlu0 %v748
      %v783 = vpop.xlane.xlu0 %782
      %784 = vmax.xlane.f32.xlu0 %v751
      %v785 = vpop.xlane.xlu0 %784
      %v802 = vlaneseq
      %v803 = vand.u32 %v802, 127
      %v804 = vlaneseq
      %v805 = vshrl.u32 %v804, 7
      %v806 = vsub.s32 %v803, %v805
      %v807 = vrot.slane %v755, %v806
      %v808 = vadd.s32 %v803, 4294967288
      %v809 = vlaneseq
      %v810 = vshrl.u32 %v809, 7
      %v811 = vsub.s32 %v808, %v810
      %v812 = vrot.slane %v757, %v811
      %vm813 = vcmask 130112
      %v814 = vsel %vm813, %v812, %v807
      %v815 = vadd.s32 %v803, 4294967280
      %v816 = vlaneseq
      %v817 = vshrl.u32 %v816, 7
      %v818 = vsub.s32 %v815, %v817
      %v819 = vrot.slane %v759, %v818
      %vm820 = vcmask 195712
      %v821 = vsel %vm820, %v819, %v814
      %v822 = vadd.s32 %v803, 4294967272
      %v823 = vlaneseq
      %v824 = vshrl.u32 %v823, 7
      %v825 = vsub.s32 %v822, %v824
      %v826 = vrot.slane %v761, %v825
      %vm827 = vcmask 261312
      %v828 = vsel %vm827, %v826, %v821
      %v829 = vadd.s32 %v803, 4294967264
      %v830 = vlaneseq
      %v831 = vshrl.u32 %v830, 7
      %v832 = vsub.s32 %v829, %v831
      %v833 = vrot.slane %v763, %v832
      %vm834 = vcmask 326912
      %v835 = vsel %vm834, %v833, %v828
      %v836 = vadd.s32 %v803, 4294967256
      %v837 = vlaneseq
      %v838 = vshrl.u32 %v837, 7
      %v839 = vsub.s32 %v836, %v838
      %v840 = vrot.slane %v765, %v839
      %vm841 = vcmask 392512
      %v842 = vsel %vm841, %v840, %v835
      %v843 = vadd.s32 %v803, 4294967248
      %v844 = vlaneseq
      %v845 = vshrl.u32 %v844, 7
      %v846 = vsub.s32 %v843, %v845
      %v847 = vrot.slane %v767, %v846
      %vm848 = vcmask 458112
      %v849 = vsel %vm848, %v847, %v842
      %v850 = vadd.s32 %v803, 4294967240
      %v851 = vlaneseq
      %v852 = vshrl.u32 %v851, 7
      %v853 = vsub.s32 %v850, %v852
      %v854 = vrot.slane %v769, %v853
      %vm855 = vcmask 523712
      %v856 = vsel %vm855, %v854, %v849
      %v857 = vadd.s32 %v803, 4294967232
      %v858 = vlaneseq
      %v859 = vshrl.u32 %v858, 7
      %v860 = vsub.s32 %v857, %v859
      %v861 = vrot.slane %v771, %v860
      %vm862 = vcmask 589312
      %v863 = vsel %vm862, %v861, %v856
      %v864 = vadd.s32 %v803, 4294967224
      %v865 = vlaneseq
      %v866 = vshrl.u32 %v865, 7
      %v867 = vsub.s32 %v864, %v866
      %v868 = vrot.slane %v773, %v867
      %vm869 = vcmask 654912
      %v870 = vsel %vm869, %v868, %v863
      %v871 = vadd.s32 %v803, 4294967216
      %v872 = vlaneseq
      %v873 = vshrl.u32 %v872, 7
      %v874 = vsub.s32 %v871, %v873
      %v875 = vrot.slane %v775, %v874
      %vm876 = vcmask 720512
      %v877 = vsel %vm876, %v875, %v870
      %v878 = vadd.s32 %v803, 4294967208
      %v879 = vlaneseq
      %v880 = vshrl.u32 %v879, 7
      %v881 = vsub.s32 %v878, %v880
      %v882 = vrot.slane %v777, %v881
      %vm883 = vcmask 786112
      %v884 = vsel %vm883, %v882, %v877
      %v885 = vadd.s32 %v803, 4294967200
      %v886 = vlaneseq
      %v887 = vshrl.u32 %v886, 7
      %v888 = vsub.s32 %v885, %v887
      %v889 = vrot.slane %v779, %v888
      %vm890 = vcmask 851712
      %v891 = vsel %vm890, %v889, %v884
      %v892 = vadd.s32 %v803, 4294967192
      %v893 = vlaneseq
      %v894 = vshrl.u32 %v893, 7
      %v895 = vsub.s32 %v892, %v894
      %v896 = vrot.slane %v781, %v895
      %vm897 = vcmask 917312
      %v898 = vsel %vm897, %v896, %v891
      %v899 = vadd.s32 %v803, 4294967184
      %v900 = vlaneseq
      %v901 = vshrl.u32 %v900, 7
      %v902 = vsub.s32 %v899, %v901
      %v903 = vrot.slane %v783, %v902
      %vm904 = vcmask 982912
      %v905 = vsel %vm904, %v903, %v898
      %v906 = vadd.s32 %v803, 4294967176
      %v907 = vlaneseq
      %v908 = vshrl.u32 %v907, 7
      %v909 = vsub.s32 %v906, %v908
      %v910 = vrot.slane %v785, %v909
      %vm911 = vcmask 1048512
      %v912 = vsel %vm911, %v910, %v905
      %914 = vst [vmem:[%s276] sm:$0x1] %v912
      %p915 = scmp.lt.s32.totalorder %s18, 1
      %s916 = scalar_select %p915, %s18, 1
      %s917 = scalar_lea.vmem %s7, %s916
      // Predicated region
      $region49: #{spatial_neighbor_embedding.1} parent=47 // pred_check
        %p918 = pneg %p188
      $region50: #{spatial_neighbor_embedding.1} parent=47 // pred_check_branch
        %920 = sbr.rel (%p918) target = $region52
      $region51: #{spatial_neighbor_embedding.1} parent=47 // pred_region
        _
      $region52: #{spatial_neighbor_embedding.1} parent=47 // pred_fallthru
        _
    $region48: #{spatial_neighbor_embedding.1} parent=5 // pred_fallthru
      _
    %p921 = scmp.le.s32.totalorder 2, %s13
    // Predicated region
    $region53: #{spatial_neighbor_embedding.1} parent=5 // pred_check
      %p922 = pneg %p921
    $region54: #{spatial_neighbor_embedding.1} parent=5 // pred_check_branch
      %924 = sbr.rel (%p922) target = $region56
    $region55: #{spatial_neighbor_embedding.1} parent=5 // pred_region
      %s925 = ssub.s32 %s13, 2
      // Predicated region
      $region57: #{spatial_neighbor_embedding.1} parent=55 // pred_check
        %p926 = pneg %p194
      $region58: #{spatial_neighbor_embedding.1} parent=55 // pred_check_branch
        %928 = sbr.rel (%p926) target = $region60
      $region59: #{spatial_neighbor_embedding.1} parent=55 // pred_region
        %p929 = scmp.lt.s32.totalorder %s19, 1
        %s930 = scalar_select %p929, %s19, 1
        %s931 = scalar_lea.vmem %s7, %s930
      $region60: #{spatial_neighbor_embedding.1} parent=55 // pred_fallthru
        _
    $region56: #{spatial_neighbor_embedding.1} parent=5 // pred_fallthru
      _
  $region6: #{spatial_neighbor_embedding.1} parent=0 // loop_footer
    %s17 = sadd.s32 1, %s13
  $region7: #{spatial_neighbor_embedding.1} parent=0 // loop_footer_branch
    %12 = sbr.rel target = $region3
  $region8: #{spatial_neighbor_embedding.1} parent=0 // loop_exit
    _

</llo_original>
